<compile_context>
chip_gen: v7x
topology: tpu7x:2x2x1
jax: 0.10.0
libtpu: 0.0.40
codegen_flags: <defaults>
</compile_context>

<pallas_src>
import functools

import jax
import jax.numpy as jnp
from jax.experimental import pallas as pl
from jax.experimental.pallas import tpu as pltpu

ALPHA = 0.25
GAMMA = 2.0   # specialized below: focal weight uses a square, not a float pow


def _focal_loss_kernel(x_ref, t_ref, out_ref, *, n_valid, alpha):
    """One tile: x_ref is (C, TILE_N) logits, t_ref is (1, TILE_N) int32 targets.

    Writes the tile's summed focal loss broadcast across a (1, 128) output
    block; partial sums are combined and divided by N in the wrapper."""
    i = pl.program_id(0)
    x = x_ref[...].astype(jnp.float32)          # cast after DMA, already in VMEM
    t = t_ref[...]                              # (1, TILE_N) int32
    c, tn = x.shape

    # log-sum-exp over classes (the sublane axis); samples stay lane-dense.
    m = jnp.max(x, axis=0, keepdims=True)                     # (1, TILE_N)
    ex = jnp.exp(x - m)                                       # (C, TILE_N)
    sumexp = jnp.sum(ex, axis=0, keepdims=True)               # (1, TILE_N)
    lse = m + jnp.log(sumexp)                                 # (1, TILE_N)

    # Select target logit / target exp via one-hot compare against the class
    # (sublane) iota -- no gather needed.
    cls = jax.lax.broadcasted_iota(jnp.int32, (c, tn), 0)
    onehot = cls == t                                         # (C, TILE_N)
    tgt_logit = jnp.sum(jnp.where(onehot, x, 0.0), axis=0, keepdims=True)
    tgt_ex = jnp.sum(jnp.where(onehot, ex, 0.0), axis=0, keepdims=True)

    ce = lse - tgt_logit                                      # per-sample CE
    # pt = exp(-ce) == exp(x_tgt - m) / sumexp : reuse exp/sumexp, no extra exp
    # pass.  (approx=True trades ~1e-4-level accuracy for a cheaper EUP op.)
    pt = tgt_ex * pl.reciprocal(sumexp, approx=False)
    one_minus_pt = jnp.maximum(1.0 - pt, 0.0)                 # clamp 1-ulp negatives

    alpha_factor = jnp.where(t == 0, 1.0 - alpha, alpha)
    focal_weight = alpha_factor * one_minus_pt * one_minus_pt  # gamma == 2.0
    loss = focal_weight * ce                                   # (1, TILE_N)

    # Mask out padded samples (ragged tail of N).
    col = jax.lax.broadcasted_iota(jnp.int32, (1, tn), 1) + i * tn
    loss = jnp.where(col < n_valid, loss, 0.0)

    tile_sum = jnp.sum(loss, axis=1, keepdims=True)            # (1, 1)
    out_ref[...] = jnp.broadcast_to(tile_sum, out_ref.shape)   # (1, 128)


def focal_loss(logits, targets, *, tile_n=16384, alpha=ALPHA):
    """logits: (N, C) float; targets: (N,) int class ids. Returns scalar mean loss."""
    n, c = logits.shape

    # Lane-dense layout: classes on sublanes, samples on lanes.
    x_t = jnp.transpose(logits)                     # (C, N), native dtype
    t_row = targets.reshape(1, n).astype(jnp.int32) # (1, N)

    # Tile over samples (multiple of 128 lanes); pad ragged tail (masked in kernel).
    # tile_n=16384 keeps per-step VMEM ~a few MiB on every chip (v7x has only
    # 64 MiB physical); v6e can raise it (e.g. 65536) for higher HBM efficiency.
    tile_n = min(tile_n, pl.cdiv(n, 128) * 128)
    n_pad = pl.cdiv(n, tile_n) * tile_n
    if n_pad != n:
        x_t = jnp.pad(x_t, ((0, 0), (0, n_pad - n)))
        t_row = jnp.pad(t_row, ((0, 0), (0, n_pad - n)))
    num_tiles = n_pad // tile_n

    partial = pl.pallas_call(
        functools.partial(_focal_loss_kernel, n_valid=n, alpha=alpha),
        out_shape=jax.ShapeDtypeStruct((1, num_tiles * 128), jnp.float32),
        grid=(num_tiles,),
        in_specs=[
            pl.BlockSpec((c, tile_n), lambda i: (0, i)),
            pl.BlockSpec((1, tile_n), lambda i: (0, i)),
        ],
        out_specs=pl.BlockSpec((1, 128), lambda i: (0, i)),
        compiler_params=pltpu.CompilerParams(
            dimension_semantics=("parallel",),      # independent tiles -> both v7x TCs
            vmem_limit_bytes=32 * 1024 * 1024,      # headroom if tile_n is raised
        ),
    )(x_t, t_row)

    # Tiny final reduction over per-tile partial sums.
    total = jnp.sum(partial.reshape(num_tiles, 128)[:, 0])
    return total / jnp.float32(n)


def focal_loss_ref(logits, targets, alpha=ALPHA, gamma=GAMMA):
    # pure-JAX reference mirroring the PyTorch module
    logp = jax.nn.log_softmax(logits.astype(jnp.float32), axis=-1)
    ce = -jnp.take_along_axis(logp, targets[:, None], axis=-1)[:, 0]
    pt = jnp.exp(-ce)
    alpha_factor = jnp.where(targets == 0, 1.0 - alpha, alpha)
    focal_weight = alpha_factor * (1.0 - pt) ** gamma
    return jnp.mean(focal_weight * ce)


if __name__ == "__main__":
    key = jax.random.PRNGKey(0)
    k1, k2, k3, k4 = jax.random.split(key, 4)

    # small config matching the module's intended use
    N, C = 64, 10
    logits = jax.random.normal(k1, (N, C), dtype=jnp.float32)
    targets = jax.random.randint(k2, (N,), 0, C, dtype=jnp.int32)
    loss = focal_loss(logits, targets)
    jax.block_until_ready(loss)
    ref = focal_loss_ref(logits, targets)
    assert jnp.allclose(loss, ref, rtol=1e-5, atol=1e-6), (loss, ref)

    # exercise the multi-tile grid + ragged-tail masking path
    N2 = 300
    logits2 = jax.random.normal(k3, (N2, C), dtype=jnp.float32)
    targets2 = jax.random.randint(k4, (N2,), 0, C, dtype=jnp.int32)
    loss2 = focal_loss(logits2, targets2, tile_n=128)
    jax.block_until_ready(loss2)
    ref2 = focal_loss_ref(logits2, targets2)
    assert jnp.allclose(loss2, ref2, rtol=1e-5, atol=1e-6), (loss2, ref2)

    print("KERNEL_OK")
</pallas_src>

<mosaic_0001>
module attributes {stable_mosaic.version = 11 : i64} {
  func.func @_focal_loss_kernel(%arg0: i32, %arg1: memref<10x128xf32, #tpu.memory_space<vmem>>, %arg2: memref<1x128xi32, #tpu.memory_space<vmem>>, %arg3: memref<1x128xf32, #tpu.memory_space<vmem>>) attributes {dimension_semantics = [#tpu.dimension_semantics<parallel>], iteration_bounds = array<i64: 1>, scalar_prefetch = 0 : i64, scratch_operands = 0 : i64, tpu.core_type = #tpu.core_type<tc>, window_params = [{transform_indices = @transform_0, window_bounds = array<i64: 10, 128>}, {transform_indices = @transform_1, window_bounds = array<i64: 1, 128>}, {transform_indices = @transform_2, window_bounds = array<i64: 1, 128>}]} {
    %c0 = arith.constant 0 : index
    %c0_0 = arith.constant 0 : index
    %0 = vector.load %arg1[%c0, %c0_0] : memref<10x128xf32, #tpu.memory_space<vmem>>, vector<10x128xf32>
    %c0_1 = arith.constant 0 : index
    %c0_2 = arith.constant 0 : index
    %1 = vector.load %arg2[%c0_1, %c0_2] : memref<1x128xi32, #tpu.memory_space<vmem>>, vector<1x128xi32>
    %cst = arith.constant dense<0xFF800000> : vector<128xf32>
    %2 = vector.multi_reduction <maximumf>, %0, %cst [0] : vector<10x128xf32> to vector<128xf32>
    %3 = vector.shape_cast %2 : vector<128xf32> to vector<1x128xf32>
    %4 = vector.broadcast %3 : vector<1x128xf32> to vector<10x128xf32>
    %5 = arith.subf %0, %4 : vector<10x128xf32>
    %6 = math.exp %5 : vector<10x128xf32>
    %cst_3 = arith.constant dense<0.000000e+00> : vector<128xf32>
    %7 = vector.multi_reduction <add>, %6, %cst_3 [0] : vector<10x128xf32> to vector<128xf32>
    %8 = vector.shape_cast %7 : vector<128xf32> to vector<1x128xf32>
    %9 = math.log %8 : vector<1x128xf32>
    %10 = arith.addf %3, %9 : vector<1x128xf32>
    %11 = tpu.iota {dimensions = array<i32: 0>} : vector<10x128xi32>
    %12 = vector.broadcast %1 : vector<1x128xi32> to vector<10x128xi32>
    %13 = arith.cmpi eq, %11, %12 : vector<10x128xi32>
    %cst_4 = arith.constant 0.000000e+00 : f32
    %14 = vector.broadcast %cst_4 : f32 to vector<10x128xf32>
    %15 = arith.select %13, %0, %14 : vector<10x128xi1>, vector<10x128xf32>
    %cst_5 = arith.constant dense<0.000000e+00> : vector<128xf32>
    %16 = vector.multi_reduction <add>, %15, %cst_5 [0] : vector<10x128xf32> to vector<128xf32>
    %17 = vector.shape_cast %16 : vector<128xf32> to vector<1x128xf32>
    %cst_6 = arith.constant 0.000000e+00 : f32
    %18 = vector.broadcast %cst_6 : f32 to vector<10x128xf32>
    %19 = arith.select %13, %6, %18 : vector<10x128xi1>, vector<10x128xf32>
    %cst_7 = arith.constant dense<0.000000e+00> : vector<128xf32>
    %20 = vector.multi_reduction <add>, %19, %cst_7 [0] : vector<10x128xf32> to vector<128xf32>
    %21 = vector.shape_cast %20 : vector<128xf32> to vector<1x128xf32>
    %22 = arith.subf %10, %17 : vector<1x128xf32>
    %23 = tpu.reciprocal %8 : vector<1x128xf32> -> vector<1x128xf32>
    %24 = arith.mulf %21, %23 : vector<1x128xf32>
    %cst_8 = arith.constant 1.000000e+00 : f32
    %25 = vector.broadcast %cst_8 : f32 to vector<1x128xf32>
    %26 = arith.subf %25, %24 : vector<1x128xf32>
    %cst_9 = arith.constant 0.000000e+00 : f32
    %27 = vector.broadcast %cst_9 : f32 to vector<1x128xf32>
    %28 = arith.maximumf %26, %27 : vector<1x128xf32>
    %c0_i32 = arith.constant 0 : i32
    %29 = vector.broadcast %c0_i32 : i32 to vector<1x128xi32>
    %30 = arith.cmpi eq, %1, %29 : vector<1x128xi32>
    %cst_10 = arith.constant 7.500000e-01 : f32
    %cst_11 = arith.constant 2.500000e-01 : f32
    %31 = vector.broadcast %cst_10 : f32 to vector<1x128xf32>
    %32 = vector.broadcast %cst_11 : f32 to vector<1x128xf32>
    %33 = arith.select %30, %31, %32 : vector<1x128xi1>, vector<1x128xf32>
    %34 = arith.mulf %33, %28 : vector<1x128xf32>
    %35 = arith.mulf %34, %28 : vector<1x128xf32>
    %36 = arith.mulf %35, %22 : vector<1x128xf32>
    %37 = tpu.iota {dimensions = array<i32: 1>} : vector<1x128xi32>
    %c128_i32 = arith.constant 128 : i32
    %38 = arith.muli %arg0, %c128_i32 : i32
    %39 = vector.broadcast %38 : i32 to vector<1x128xi32>
    %40 = arith.addi %37, %39 : vector<1x128xi32>
    %c64_i32 = arith.constant 64 : i32
    %41 = vector.broadcast %c64_i32 : i32 to vector<1x128xi32>
    %42 = arith.cmpi slt, %40, %41 : vector<1x128xi32>
    %cst_12 = arith.constant 0.000000e+00 : f32
    %43 = vector.broadcast %cst_12 : f32 to vector<1x128xf32>
    %44 = arith.select %42, %36, %43 : vector<1x128xi1>, vector<1x128xf32>
    %cst_13 = arith.constant dense<0.000000e+00> : vector<1xf32>
    %45 = vector.multi_reduction <add>, %44, %cst_13 [1] : vector<1x128xf32> to vector<1xf32>
    %46 = vector.shape_cast %45 : vector<1xf32> to vector<1x1xf32>
    %47 = vector.shape_cast %46 : vector<1x1xf32> to vector<1x1xf32>
    %48 = vector.broadcast %47 : vector<1x1xf32> to vector<1x128xf32>
    %c0_14 = arith.constant 0 : index
    %c0_15 = arith.constant 0 : index
    %49 = vector.load %arg3[%c0_14, %c0_15] : memref<1x128xf32, #tpu.memory_space<vmem>>, vector<1x128xf32>
    tpu.vector_store %arg3[%c0_14, %c0_15], %48 {strides = array<i32>} : memref<1x128xf32, #tpu.memory_space<vmem>>, vector<1x128xf32>,
    return
  }
  func.func @transform_0(%arg0: i32) -> (i32, i32) {
    %c0_i32 = arith.constant 0 : i32
    %c0_i32_0 = arith.constant 0 : i32
    return %c0_i32, %arg0 : i32, i32
  }
  func.func @transform_1(%arg0: i32) -> (i32, i32) {
    %c0_i32 = arith.constant 0 : i32
    %c0_i32_0 = arith.constant 0 : i32
    return %c0_i32, %arg0 : i32, i32
  }
  func.func @transform_2(%arg0: i32) -> (i32, i32) {
    %c0_i32 = arith.constant 0 : i32
    %c0_i32_0 = arith.constant 0 : i32
    return %c0_i32, %arg0 : i32, i32
  }
}

</mosaic_0001>

<llo_original>
// kernel: tpu_custom_call.1
$region0: #{tpu_custom_call.1}
  #allocation0 [shape = 'u32[]', space=smem, size = 0x4, offset = 0x4, fixed_abs, tag = 'smem constant byte address 0x4 - core index']
  #allocation1 [shape = 'u32[144,128]{1,0:T(1,128)}', space=vmem, size = 0x12000, scoped, tag = 'internal scratch']
  %s0 = inlined_call_operand.hbm [shape: f32[10,128], index: 0, kind: input, shape index: {}]
  %s1 = inlined_call_operand.vmem [shape: s32[1,128], index: 1, kind: input, shape index: {}]
  %s2 = inlined_call_operand.hbm [shape: f32[1,128], index: 2, kind: output, shape index: {}]
  %s3 = sld [smem:[#allocation0]]
  $region22: #{tpu_custom_call.1} parent=0
    _
  %s5 = ssub.s32 1, %s3
  %s6 = scalar_select 0, %s5, %s3
  $region1: #{tpu_custom_call.1} parent=0
    #allocation2 [shape = 'u8[8192]{0}', space=vmem, size = 0x2000, scoped, tag = 'input window, operand 0, single buffered']
    #allocation3 [shape = 's32[1]{0}', space=sflag, size = 0x4, scoped, tag = 'scoped memory for tpu_custom_call.1']
    #allocation4 [shape = 's32[1]{0}', space=sflag, size = 0x4, scoped, tag = 'scoped memory for tpu_custom_call.1']
    #allocation5 [shape = 'u8[512]{0}', space=vmem, size = 0x400, scoped, tag = 'output window, operand 0, single buffered']
    %7 = vsyncpa [#allocation3], 0
    %8 = vsyncpa [#allocation4], 0
    // Predicated region
    $region2: #{tpu_custom_call.1} parent=1 // pred_check
      _
    $region3: #{tpu_custom_call.1} parent=1 // pred_check_branch
      %10 = sbr.rel (0) target = $region5
    $region4: #{tpu_custom_call.1} parent=1 // pred_region
      %s12 = ssub.s32 256, 256
      %13 = vsyncadd [#allocation3], %s12
      %s14 = sshll.u32 [#allocation2], 4
      %s15 = int_to_ptr.vmem [resolvable:$true] %s14
      %20 = dma.hbm_to_vmem [thread:$0]  %s0, 256, %s15, [#allocation3], 128, 128, 8
    $region5: #{tpu_custom_call.1} parent=1 // pred_fallthru
      _
    // Predicated region
    $region6: #{tpu_custom_call.1} parent=1 // pred_check
      _
    $region7: #{tpu_custom_call.1} parent=1 // pred_check_branch
      %22 = sbr.rel (0) target = $region9
    $region8: #{tpu_custom_call.1} parent=1 // pred_region
      _
    $region9: #{tpu_custom_call.1} parent=1 // pred_fallthru
      _
    // Predicated region
    $region10: #{tpu_custom_call.1} parent=1 // pred_check
      _
    $region11: #{tpu_custom_call.1} parent=1 // pred_check_branch
      %24 = sbr.rel (0) target = $region13
    $region12: #{tpu_custom_call.1} parent=1 // pred_region
      %25 = dma.done [#allocation3], 256
    $region13: #{tpu_custom_call.1} parent=1 // pred_fallthru
      _
    %v26 = vld [vmem:[#allocation2] sm:$0xff]
    %v27 = vld [vmem:[#allocation2 + $0x8] sm:$0x3]
    %v28 = vld [vmem:[%s1] sm:$0x1]
    %vm29 = vcmask 1041408
    %v30 = vsel %vm29, %v27, -inf
    %v31 = vmax.f32 %v26, %v30
    %v32 = vrot.slane %v31, 4
    %v33 = vmax.f32 %v31, %v32
    %v34 = vrot.slane %v33, 2
    %v35 = vmax.f32 %v33, %v34
    %v36 = vrot.slane %v35, 1
    %v37 = vmax.f32 %v35, %v36
    %v38 = vsub.f32 %v26, %v37
    %v39 = vsub.f32 %v27, %v37
    %v40 = vmul.f32 %v38, 1.442695
    %v41 = vpow.pop %v40
    %v42 = vmul.f32 %v39, 1.442695
    %v43 = vpow.pop %v42
    %v44 = vsel %vm29, %v43, 0.0
    %v45 = vadd.f32 %v41, %v44
    %v46 = vrot.slane %v45, 4
    %v47 = vadd.f32 %v45, %v46
    %v48 = vrot.slane %v47, 2
    %v49 = vadd.f32 %v47, %v48
    %v50 = vrot.slane %v49, 1
    %v51 = vadd.f32 %v49, %v50
    %v52 = vlog2.pop %v51
    %v53 = vmul.f32 %v52, 0.6931472
    %v54 = vadd.f32 %v37, %v53
    %v55 = vlaneseq
    %v56 = vshrl.u32 %v55, 7
    %v57 = vadd.s32 %v56, 8
    %v58 = vlaneseq
    %v59 = vshrl.u32 %v58, 7
    %v60 = vsub.s32 0, %v59
    %v61 = vrot.slane %v28, %v60
    %vm62 = vcmp.eq.s32.totalorder %v56, %v61
    %vm63 = vcmp.eq.s32.totalorder %v57, %v61
    %v64 = vsel %vm62, %v26, 0.0
    %v65 = vsel %vm63, %v27, 0.0
    %v66 = vsel %vm29, %v65, 0.0
    %v67 = vadd.f32 %v64, %v66
    %v68 = vrot.slane %v67, 4
    %v69 = vadd.f32 %v67, %v68
    %v70 = vrot.slane %v69, 2
    %v71 = vadd.f32 %v69, %v70
    %v72 = vrot.slane %v71, 1
    %v73 = vadd.f32 %v71, %v72
    %v74 = vsel %vm62, %v41, 0.0
    %v75 = vsel %vm63, %v43, 0.0
    %v76 = vsel %vm29, %v75, 0.0
    %v77 = vadd.f32 %v74, %v76
    %v78 = vrot.slane %v77, 4
    %v79 = vadd.f32 %v77, %v78
    %v80 = vrot.slane %v79, 2
    %v81 = vadd.f32 %v79, %v80
    %v82 = vrot.slane %v81, 1
    %v83 = vadd.f32 %v81, %v82
    %v84 = vsub.f32 %v54, %v73
    %v85 = vrcp.pop %v51
    %v86 = vmul.f32 %v83, %v85
    %v87 = vsub.f32 1.0, %v86
    %v88 = vmax.f32 %v87, 0.0
    %vm89 = vcmp.eq.s32.totalorder %v28, 0
    %v90 = vsel %vm89, 0.75, 0.25
    %v91 = vmul.f32 %v90, %v88
    %v92 = vmul.f32 %v91, %v88
    %v93 = vmul.f32 %v92, %v84
    %v94 = vlaneseq
    %v95 = vand.u32 %v94, 127
    %s96 = smul.u32 0, 128
    %v97 = vstv %s96
    %v98 = vadd.s32 %v95, %v97
    %vm99 = vcmp.lt.s32.totalorder %v98, 64
    %v100 = vsel %vm99, %v93, 0.0
    %vm101 = vcmask 1040384
    %v102 = vsel %vm101, %v100, 0.0
    %103 = vadd.xlane.f32.xlu0 %v102
    %v104 = vpop.xlane.xlu0 %103
    %105 = vst [vmem:[#allocation5] sm:$0x1] %v104
    // Predicated region
    $region14: #{tpu_custom_call.1} parent=1 // pred_check
      _
    $region15: #{tpu_custom_call.1} parent=1 // pred_check_branch
      %107 = sbr.rel (0) target = $region17
    $region16: #{tpu_custom_call.1} parent=1 // pred_region
      %s109 = ssub.s32 16, 16
      %110 = vsyncadd [#allocation4], %s109
      %s112 = sshll.u32 [#allocation5], 4
      %s113 = int_to_ptr.vmem [resolvable:$true] %s112
      %115 = dma.vmem_to_hbm [thread:$0]  %s113, 16, %s2, [#allocation4]
    $region17: #{tpu_custom_call.1} parent=1 // pred_fallthru
      _
    // Predicated region
    $region18: #{tpu_custom_call.1} parent=1 // pred_check
      _
    $region19: #{tpu_custom_call.1} parent=1 // pred_check_branch
      %117 = sbr.rel (0) target = $region21
    $region20: #{tpu_custom_call.1} parent=1 // pred_region
      %118 = dma.done [#allocation4], 16
    $region21: #{tpu_custom_call.1} parent=1 // pred_fallthru
      _
    %119 = vsyncpa [#allocation3], 1
    %120 = vsyncpa [#allocation4], 1

</llo_original>
